<compile_context>
chip_gen: v7x
topology: tpu7x:2x2x1
jax: 0.10.0
libtpu: 0.0.40
codegen_flags: <defaults>
</compile_context>

<pallas_src>
import math
import functools

import jax
import jax.numpy as jnp
from jax import lax
from jax.experimental import pallas as pl
from jax.experimental.pallas import tpu as pltpu


def tran_layer_kernel(x_ref, w1_ref, we_ref, bn_ref, be_ref, out_ref):
    # x_ref  : (TB, N*E) input dtype (bf16/f32), VMEM (streamed tile)
    # w1_ref : (N*E, E)  f32 VMEM, kron(w_nodes, I_E)  (resident)
    # we_ref : (E, 1)    f32 VMEM, embed weights as a column (resident)
    # bn_ref : (1,)      f32 SMEM scalar (linear_nodes bias)
    # be_ref : (1,)      f32 SMEM scalar (linear_embed bias)
    # out_ref: (TB, 1)   f32 VMEM
    x = x_ref[...].astype(jnp.float32)           # cheap per-tile upcast (VPU)

    # Stage 1 on the MXU: grouped N-contraction via the kron'd weight.
    # (TB, N*E) @ (N*E, E) -> (TB, E), f32 accumulate.
    agg = jnp.dot(x, w1_ref[...],
                  precision=lax.Precision.HIGHEST,
                  preferred_element_type=jnp.float32)
    agg = jnp.maximum(agg + bn_ref[0], 0.0)      # relu(x^T @ w_nodes + b_nodes)

    # Stage 2 on the MXU in natural orientation: (TB, E) @ (E, 1) -> (TB, 1).
    # No transpose of the big operand; the (TB,1) writeback hides under DMA.
    out = jnp.dot(agg, we_ref[...],
                  precision=lax.Precision.HIGHEST,
                  preferred_element_type=jnp.float32)
    out_ref[...] = jnp.maximum(out + be_ref[0], 0.0)


def _pick_batch_tile(batch, bytes_per_row, tile_bytes, min_steps=4):
    """Rows per grid step.

    - If the whole batch fits one buffer, still split it into >= min_steps
      tiles (rounded to a multiple of 8 rows) so the pipeline double-buffers
      and v7x megacore gets work on both TensorCores.
    - Otherwise take the largest multiple of 128 rows that fits the budget.
    """
    budget_rows = max(1, tile_bytes // max(bytes_per_row, 1))
    if batch <= budget_rows:
        split = ((batch + min_steps - 1) // min_steps + 7) // 8 * 8
        if 8 <= split < batch:
            return split
        return batch
    return min(max((budget_rows // 128) * 128, 128), batch)


@functools.partial(jax.jit, static_argnames=("tile_bytes",))
def tran_layer_forward(x, w_nodes, b_nodes, w_embed, b_embed,
                       *, tile_bytes=4 * 1024 * 1024):
    """x: (B, num_nodes, embed_dim), any float dtype.  Returns (B, 1) f32."""
    B, N, E = x.shape
    NE = N * E

    # Host-side layout prep (tiny / metadata-only) — not on the hot path.
    xf = x.reshape(B, NE)                                    # contiguous reshape
    # W1[n*E + r, c] = w_nodes[n] * (r == c)  =>  xf @ W1 == sum_n x[:,n,:]*w_nodes[n]
    w1 = jnp.kron(w_nodes.reshape(N, 1).astype(jnp.float32),
                  jnp.eye(E, dtype=jnp.float32))             # (NE, E)
    we_col = w_embed.reshape(E, 1).astype(jnp.float32)       # (E, 1)
    bn = b_nodes.reshape(1).astype(jnp.float32)
    be = b_embed.reshape(1).astype(jnp.float32)

    TB = _pick_batch_tile(B, NE * x.dtype.itemsize, tile_bytes)
    grid = (pl.cdiv(B, TB),)

    cost = pl.CostEstimate(
        flops=2 * B * NE * E + 2 * B * E,
        transcendentals=0,
        bytes_accessed=(B * NE * x.dtype.itemsize      # x stream
                        + B * 4                        # output
                        + (NE * E + E) * 4 + 2 * 4),   # weights + biases
    )

    out = pl.pallas_call(
        tran_layer_kernel,
        out_shape=jax.ShapeDtypeStruct((B, 1), jnp.float32),
        grid=grid,
        in_specs=[
            pl.BlockSpec((TB, NE), lambda i: (i, 0)),           # streamed x
            pl.BlockSpec((NE, E), lambda i: (0, 0)),            # resident kron weight
            pl.BlockSpec((E, 1), lambda i: (0, 0)),             # resident embed weight
            pl.BlockSpec(memory_space=pltpu.MemorySpace.SMEM),  # b_nodes scalar
            pl.BlockSpec(memory_space=pltpu.MemorySpace.SMEM),  # b_embed scalar
        ],
        out_specs=pl.BlockSpec((TB, 1), lambda i: (i, 0)),      # per-tile rows
        compiler_params=pltpu.CompilerParams(
            dimension_semantics=("parallel",),                  # megacore on v7x
            vmem_limit_bytes=32 * 1024 * 1024,
        ),
        cost_estimate=cost,
    )(xf, w1, we_col, bn, be)

    return out


def init_params(key, num_nodes, embed_dim):
    """Deterministic init mirroring TranLayer.__init__ / reset_parameters."""
    k1, k2, k3, k4 = jax.random.split(key, 4)
    gain = math.sqrt(2.0)  # calculate_gain('relu')
    std_n = gain * math.sqrt(2.0 / (num_nodes + 1))
    std_e = gain * math.sqrt(2.0 / (embed_dim + 1))
    w_nodes = std_n * jax.random.normal(k1, (1, num_nodes), jnp.float32)
    w_embed = std_e * jax.random.normal(k2, (1, embed_dim), jnp.float32)
    bnd_n = 1.0 / math.sqrt(num_nodes)
    bnd_e = 1.0 / math.sqrt(embed_dim)
    b_nodes = jax.random.uniform(k3, (1,), jnp.float32, -bnd_n, bnd_n)
    b_embed = jax.random.uniform(k4, (1,), jnp.float32, -bnd_e, bnd_e)
    return w_nodes, b_nodes, w_embed, b_embed


def _reference(x, w_nodes, b_nodes, w_embed, b_embed):
    # Plain-JAX reference (f32 everywhere).
    xf = x.astype(jnp.float32)
    agg = jnp.maximum(jnp.einsum("bne,n->be", xf, w_nodes[0]) + b_nodes[0], 0.0)
    out = jnp.sum(agg * w_embed[0][None, :], axis=1, keepdims=True) + b_embed[0]
    return jnp.maximum(out, 0.0)


if __name__ == "__main__":
    num_nodes, embed_dim = 4, 32
    key = jax.random.PRNGKey(0)
    kx, kp = jax.random.split(key)
    w_nodes, b_nodes, w_embed, b_embed = init_params(kp, num_nodes, embed_dim)

    # Small shape implied by the module's forward: (batch=2, nodes=4, embed=32),
    # fed as bf16 (kernel casts per tile and accumulates in f32).
    B = 2
    x = jax.random.normal(kx, (B, num_nodes, embed_dim), jnp.float32)
    x = x.astype(jnp.bfloat16)
    out = jax.block_until_ready(
        tran_layer_forward(x, w_nodes, b_nodes, w_embed, b_embed))
    ref = _reference(x, w_nodes, b_nodes, w_embed, b_embed)
    assert out.shape == (B, 1)
    assert jnp.allclose(out, ref, atol=1e-4, rtol=1e-4)

    # Larger batch: exercises the >=4-step pipelined grid (TB=128, 4 steps).
    B2 = 512
    x2 = jax.random.normal(kx, (B2, num_nodes, embed_dim), jnp.float32)
    x2 = x2.astype(jnp.bfloat16)
    out2 = jax.block_until_ready(
        tran_layer_forward(x2, w_nodes, b_nodes, w_embed, b_embed))
    ref2 = _reference(x2, w_nodes, b_nodes, w_embed, b_embed)
    assert out2.shape == (B2, 1)
    assert jnp.allclose(out2, ref2, atol=1e-4, rtol=1e-4)

    # Non-divisible batch: last block is padded (reads past B are dropped by
    # the bounded writeback; rows are independent so padding is harmless).
    B3 = 130
    x3 = jax.random.normal(kx, (B3, num_nodes, embed_dim), jnp.float32)
    x3 = x3.astype(jnp.bfloat16)
    out3 = jax.block_until_ready(
        tran_layer_forward(x3, w_nodes, b_nodes, w_embed, b_embed))
    ref3 = _reference(x3, w_nodes, b_nodes, w_embed, b_embed)
    assert out3.shape == (B3, 1)
    assert jnp.allclose(out3, ref3, atol=1e-4, rtol=1e-4)

    print("KERNEL_OK")
</pallas_src>

<mosaic_0001>
module attributes {stable_mosaic.version = 11 : i64} {
  func.func @tran_layer_kernel(%arg0: i32, %arg1: memref<2x128xbf16, #tpu.memory_space<vmem>>, %arg2: memref<128x32xf32, #tpu.memory_space<vmem>>, %arg3: memref<32x1xf32, #tpu.memory_space<vmem>>, %arg4: memref<1xf32, #tpu.memory_space<smem>>, %arg5: memref<1xf32, #tpu.memory_space<smem>>, %arg6: memref<2x1xf32, #tpu.memory_space<vmem>>) attributes {dimension_semantics = [#tpu.dimension_semantics<parallel>], iteration_bounds = array<i64: 1>, scalar_prefetch = 0 : i64, scratch_operands = 0 : i64, tpu.core_type = #tpu.core_type<tc>, window_params = [{transform_indices = @transform_0, window_bounds = array<i64: 2, 128>}, {pipeline_mode = #tpu.pipeline_mode<synchronous>, transform_indices = @transform_1, window_bounds = array<i64: 128, 32>}, {pipeline_mode = #tpu.pipeline_mode<synchronous>, transform_indices = @transform_2, window_bounds = array<i64: 32, 1>}, {transform_indices = @transform_3, window_bounds = array<i64: 1>}, {transform_indices = @transform_4, window_bounds = array<i64: 1>}, {transform_indices = @transform_5, window_bounds = array<i64: 2, 1>}]} {
    %c0 = arith.constant 0 : index
    %c0_0 = arith.constant 0 : index
    %0 = vector.load %arg1[%c0, %c0_0] : memref<2x128xbf16, #tpu.memory_space<vmem>>, vector<2x128xbf16>
    %1 = arith.extf %0 : vector<2x128xbf16> to vector<2x128xf32>
    %c0_1 = arith.constant 0 : index
    %c0_2 = arith.constant 0 : index
    %2 = vector.load %arg2[%c0_1, %c0_2] : memref<128x32xf32, #tpu.memory_space<vmem>>, vector<128x32xf32>
    %cst = arith.constant dense<0.000000e+00> : vector<2x32xf32>
    %3 = tpu.matmul %1, %2, %cst {dimension_numbers = #tpu.dot_dimension_numbers<[1], [0], [0], [1], [0, 0, 1, 1], [], []>, precision = #tpu.contract_precision<fp32>} : vector<2x128xf32>, vector<128x32xf32>, vector<2x32xf32> -> vector<2x32xf32>
    %c0_3 = arith.constant 0 : index
    %4 = memref.load %arg4[%c0_3] : memref<1xf32, #tpu.memory_space<smem>>
    %5 = vector.broadcast %4 : f32 to vector<2x32xf32>
    %6 = arith.addf %3, %5 : vector<2x32xf32>
    %cst_4 = arith.constant 0.000000e+00 : f32
    %7 = vector.broadcast %cst_4 : f32 to vector<2x32xf32>
    %8 = arith.maximumf %6, %7 : vector<2x32xf32>
    %c0_5 = arith.constant 0 : index
    %c0_6 = arith.constant 0 : index
    %9 = vector.load %arg3[%c0_5, %c0_6] : memref<32x1xf32, #tpu.memory_space<vmem>>, vector<32x1xf32>
    %cst_7 = arith.constant dense<0.000000e+00> : vector<2x1xf32>
    %10 = tpu.matmul %8, %9, %cst_7 {dimension_numbers = #tpu.dot_dimension_numbers<[1], [0], [0], [1], [0, 0, 1, 1], [], []>, precision = #tpu.contract_precision<fp32>} : vector<2x32xf32>, vector<32x1xf32>, vector<2x1xf32> -> vector<2x1xf32>
    %c0_8 = arith.constant 0 : index
    %11 = memref.load %arg5[%c0_8] : memref<1xf32, #tpu.memory_space<smem>>
    %12 = vector.broadcast %11 : f32 to vector<2x1xf32>
    %13 = arith.addf %10, %12 : vector<2x1xf32>
    %cst_9 = arith.constant 0.000000e+00 : f32
    %14 = vector.broadcast %cst_9 : f32 to vector<2x1xf32>
    %15 = arith.maximumf %13, %14 : vector<2x1xf32>
    %c0_10 = arith.constant 0 : index
    %c0_11 = arith.constant 0 : index
    %16 = vector.load %arg6[%c0_10, %c0_11] : memref<2x1xf32, #tpu.memory_space<vmem>>, vector<2x1xf32>
    tpu.vector_store %arg6[%c0_10, %c0_11], %15 {strides = array<i32>} : memref<2x1xf32, #tpu.memory_space<vmem>>, vector<2x1xf32>,
    return
  }
  func.func @transform_0(%arg0: i32) -> (i32, i32) {
    %c0_i32 = arith.constant 0 : i32
    %c0_i32_0 = arith.constant 0 : i32
    return %arg0, %c0_i32 : i32, i32
  }
  func.func @transform_1(%arg0: i32) -> (i32, i32) {
    %c0_i32 = arith.constant 0 : i32
    %c0_i32_0 = arith.constant 0 : i32
    %c0_i32_1 = arith.constant 0 : i32
    return %c0_i32, %c0_i32_0 : i32, i32
  }
  func.func @transform_2(%arg0: i32) -> (i32, i32) {
    %c0_i32 = arith.constant 0 : i32
    %c0_i32_0 = arith.constant 0 : i32
    %c0_i32_1 = arith.constant 0 : i32
    return %c0_i32, %c0_i32_0 : i32, i32
  }
  func.func @transform_3(%arg0: i32) -> i32 {
    %c0_i32 = arith.constant 0 : i32
    %c0_i32_0 = arith.constant 0 : i32
    return %c0_i32 : i32
  }
  func.func @transform_4(%arg0: i32) -> i32 {
    %c0_i32 = arith.constant 0 : i32
    %c0_i32_0 = arith.constant 0 : i32
    return %c0_i32 : i32
  }
  func.func @transform_5(%arg0: i32) -> (i32, i32) {
    %c0_i32 = arith.constant 0 : i32
    %c0_i32_0 = arith.constant 0 : i32
    return %arg0, %c0_i32 : i32, i32
  }
}

</mosaic_0001>

<llo_original>
// kernel: tran_layer_forward.1
$region0: #{tran_layer_forward.1}
  #allocation0 [shape = 'u32[]', space=smem, size = 0x4, offset = 0x4, fixed_abs, tag = 'smem constant byte address 0x4 - core index']
  #allocation1 [shape = 'u32[144,128]{1,0:T(1,128)}', space=vmem, size = 0x12000, scoped, tag = 'internal scratch']
  #allocation2 [shape = 'f32[1]{0:T(128)S(6)}', space=smem, size = 0x200, scoped, tag = 'scoped memory for tran_layer_forward.1']
  #allocation3 [shape = 'f32[1]{0:T(128)S(6)}', space=smem, size = 0x200, scoped, tag = 'scoped memory for tran_layer_forward.1']
  %s0 = inlined_call_operand.vmem [shape: bf16[2,128], index: 0, kind: input, shape index: {}]
  %s1 = inlined_call_operand.vmem [shape: f32[128,32], index: 1, kind: input, shape index: {}]
  %s2 = inlined_call_operand.vmem [shape: f32[32,1], index: 2, kind: input, shape index: {}]
  %s3 = inlined_call_operand.<no memory space> [shape: f32[1], index: 3, kind: input, shape index: {}]
  %s4 = inlined_call_operand.<no memory space> [shape: f32[1], index: 4, kind: input, shape index: {}]
  %s5 = inlined_call_operand.vmem [shape: f32[2,1], index: 5, kind: output, shape index: {}]
  %s6 = sld [smem:[#allocation0]]
  $region30: #{tran_layer_forward.1} parent=0
    _
  %s8 = ssub.s32 1, %s6
  %s9 = scalar_select 0, %s8, %s6
  %10 = sst [smem:[#allocation2]] %s3
  %11 = sst [smem:[#allocation3]] %s4
  // Predicated region
  $region2: #{tran_layer_forward.1} parent=0 // pred_check
    _
  $region3: #{tran_layer_forward.1} parent=0 // pred_check_branch
    %13 = sbr.rel (0) target = $region5
  $region4: #{tran_layer_forward.1} parent=0 // pred_region
    _
  $region5: #{tran_layer_forward.1} parent=0 // pred_fallthru
    _
  // Predicated region
  $region6: #{tran_layer_forward.1} parent=0 // pred_check
    _
  $region7: #{tran_layer_forward.1} parent=0 // pred_check_branch
    %15 = sbr.rel (0) target = $region9
  $region8: #{tran_layer_forward.1} parent=0 // pred_region
    _
  $region9: #{tran_layer_forward.1} parent=0 // pred_fallthru
    _
  // Predicated region
  $region10: #{tran_layer_forward.1} parent=0 // pred_check
    _
  $region11: #{tran_layer_forward.1} parent=0 // pred_check_branch
    %17 = sbr.rel (0) target = $region13
  $region12: #{tran_layer_forward.1} parent=0 // pred_region
    _
  $region13: #{tran_layer_forward.1} parent=0 // pred_fallthru
    _
  // Predicated region
  $region14: #{tran_layer_forward.1} parent=0 // pred_check
    _
  $region15: #{tran_layer_forward.1} parent=0 // pred_check_branch
    %19 = sbr.rel (0) target = $region17
  $region16: #{tran_layer_forward.1} parent=0 // pred_region
    _
  $region17: #{tran_layer_forward.1} parent=0 // pred_fallthru
    _
  // Predicated region
  $region18: #{tran_layer_forward.1} parent=0 // pred_check
    _
  $region19: #{tran_layer_forward.1} parent=0 // pred_check_branch
    %21 = sbr.rel (0) target = $region21
  $region20: #{tran_layer_forward.1} parent=0 // pred_region
    _
  $region21: #{tran_layer_forward.1} parent=0 // pred_fallthru
    _
  %v22 = vld [vmem:[%s0] sm:$0x1]
  %v23 = vunpack.c.l.bf16 %v22
  %v24 = vld [vmem:[%s1] sm:$0xff]
  %v25 = vld [vmem:[%s1 + $0x8] sm:$0xff]
  %v26 = vld [vmem:[%s1 + $0x10] sm:$0xff]
  %v27 = vld [vmem:[%s1 + $0x18] sm:$0xff]
  %v28 = vld [vmem:[%s1 + $0x20] sm:$0xff]
  %v29 = vld [vmem:[%s1 + $0x28] sm:$0xff]
  %v30 = vld [vmem:[%s1 + $0x30] sm:$0xff]
  %v31 = vld [vmem:[%s1 + $0x38] sm:$0xff]
  %v32 = vld [vmem:[%s1 + $0x40] sm:$0xff]
  %v33 = vld [vmem:[%s1 + $0x48] sm:$0xff]
  %v34 = vld [vmem:[%s1 + $0x50] sm:$0xff]
  %v35 = vld [vmem:[%s1 + $0x58] sm:$0xff]
  %v36 = vld [vmem:[%s1 + $0x60] sm:$0xff]
  %v37 = vld [vmem:[%s1 + $0x68] sm:$0xff]
  %v38 = vld [vmem:[%s1 + $0x70] sm:$0xff]
  %v39 = vld [vmem:[%s1 + $0x78] sm:$0xff]
  %s40 = sld [smem:[#allocation2]]
  %v41 = vstv %s40
  %42 = vmatprep.subr.mxu0 0.0
  %v43 = vand.u32 %v24, 4294901760
  %44 = vmatpush1.msra.mxu0 %v43
  %45 = vmatprep.subr.mxu0 0.0
  %v46 = vand.u32 %v25, 4294901760
  %47 = vmatpush1.msra.mxu0 %v46
  %48 = vmatprep.subr.mxu0 0.0
  %v49 = vand.u32 %v26, 4294901760
  %50 = vmatpush1.msra.mxu0 %v49
  %51 = vmatprep.subr.mxu0 0.0
  %v52 = vand.u32 %v27, 4294901760
  %53 = vmatpush1.msra.mxu0 %v52
  %54 = vmatprep.subr.mxu0 0.0
  %v55 = vand.u32 %v28, 4294901760
  %56 = vmatpush1.msra.mxu0 %v55
  %57 = vmatprep.subr.mxu0 0.0
  %v58 = vand.u32 %v29, 4294901760
  %59 = vmatpush1.msra.mxu0 %v58
  %60 = vmatprep.subr.mxu0 0.0
  %v61 = vand.u32 %v30, 4294901760
  %62 = vmatpush1.msra.mxu0 %v61
  %63 = vmatprep.subr.mxu0 0.0
  %v64 = vand.u32 %v31, 4294901760
  %65 = vmatpush1.msra.mxu0 %v64
  %66 = vmatprep.subr.mxu0 0.0
  %v67 = vand.u32 %v32, 4294901760
  %68 = vmatpush1.msra.mxu0 %v67
  %69 = vmatprep.subr.mxu0 0.0
  %v70 = vand.u32 %v33, 4294901760
  %71 = vmatpush1.msra.mxu0 %v70
  %72 = vmatprep.subr.mxu0 0.0
  %v73 = vand.u32 %v34, 4294901760
  %74 = vmatpush1.msra.mxu0 %v73
  %75 = vmatprep.subr.mxu0 0.0
  %v76 = vand.u32 %v35, 4294901760
  %77 = vmatpush1.msra.mxu0 %v76
  %78 = vmatprep.subr.mxu0 0.0
  %v79 = vand.u32 %v36, 4294901760
  %80 = vmatpush1.msra.mxu0 %v79
  %81 = vmatprep.subr.mxu0 0.0
  %v82 = vand.u32 %v37, 4294901760
  %83 = vmatpush1.msra.mxu0 %v82
  %84 = vmatprep.subr.mxu0 0.0
  %v85 = vand.u32 %v38, 4294901760
  %86 = vmatpush1.msra.mxu0 %v85
  %87 = vmatprep.subr.mxu0 0.0
  %v88 = vand.u32 %v39, 4294901760
  %89 = vmatpush1.msra.mxu0 %v88
  %90 = vmatprep.subr.mxu0 0.0
  %91 = vmatpush1.msra.mxu0 0.0
  %92 = vmatprep.subr.mxu0 0.0
  %93 = vmatpush1.msra.mxu0 0.0
  %94 = vmatprep.subr.mxu0 0.0
  %95 = vmatpush1.msra.mxu0 0.0
  %96 = vmatprep.subr.mxu0 0.0
  %97 = vmatpush1.msra.mxu0 0.0
  %98 = vmatprep.subr.mxu0 0.0
  %99 = vmatpush1.msra.mxu0 0.0
  %100 = vmatprep.subr.mxu0 0.0
  %101 = vmatpush1.msra.mxu0 0.0
  %102 = vmatprep.subr.mxu0 0.0
  %103 = vmatpush1.msra.mxu0 0.0
  %104 = vmatprep.subr.mxu0 0.0
  %105 = vmatpush1.msra.mxu0 0.0
  %106 = vmatprep.subr.mxu0 0.0
  %107 = vmatpush1.msra.mxu0 0.0
  %108 = vmatprep.subr.mxu0 0.0
  %109 = vmatpush1.msra.mxu0 0.0
  %110 = vmatprep.subr.mxu0 0.0
  %111 = vmatpush1.msra.mxu0 0.0
  %112 = vmatprep.subr.mxu0 0.0
  %113 = vmatpush1.msra.mxu0 0.0
  %114 = vmatprep.subr.mxu0 0.0
  %115 = vmatpush1.msra.mxu0 0.0
  %116 = vmatprep.subr.mxu0 0.0
  %117 = vmatpush1.msra.mxu0 0.0
  %118 = vmatprep.subr.mxu0 0.0
  %119 = vmatpush1.msra.mxu0 0.0
  %120 = vmatprep.subr.mxu0 0.0
  %121 = vmatpush1.msra.mxu0 0.0
  %122 = vmatprep.mubr.f32.mxu0 0.0
  %v123 = vsub.f32 %v23, %v23
  %v124 = vand.u32 %v123, 4294901760
  %v125 = vsub.f32 %v123, %v124
  %v126 = vand.u32 %v125, 4294901760
  %127 = vmatmul.mubr.f32.gmra.mrb[0].mxu0 %v126
  %v128 = vpop.f32.mrb[0].mxu0
  %v129 = vadd.f32 %v41, %v128
  %v130 = vpop.f32.mrb[0].mxu0
  %131 = vdwg.mxu0
  %132 = vmatprep.subr.mxu0 0.0
  %v133 = vand.u32 %v24, 4294901760
  %v134 = vsub.f32 %v24, %v133
  %v135 = vand.u32 %v134, 4294901760
  %v136 = vsub.f32 %v134, %v135
  %v137 = vand.u32 %v136, 4294901760
  %138 = vmatpush1.msra.mxu0 %v137
  %139 = vmatprep.subr.mxu0 0.0
  %v140 = vand.u32 %v25, 4294901760
  %v141 = vsub.f32 %v25, %v140
  %v142 = vand.u32 %v141, 4294901760
  %v143 = vsub.f32 %v141, %v142
  %v144 = vand.u32 %v143, 4294901760
  %145 = vmatpush1.msra.mxu0 %v144
  %146 = vmatprep.subr.mxu0 0.0
  %v147 = vand.u32 %v26, 4294901760
  %v148 = vsub.f32 %v26, %v147
  %v149 = vand.u32 %v148, 4294901760
  %v150 = vsub.f32 %v148, %v149
  %v151 = vand.u32 %v150, 4294901760
  %152 = vmatpush1.msra.mxu0 %v151
  %153 = vmatprep.subr.mxu0 0.0
  %v154 = vand.u32 %v27, 4294901760
  %v155 = vsub.f32 %v27, %v154
  %v156 = vand.u32 %v155, 4294901760
  %v157 = vsub.f32 %v155, %v156
  %v158 = vand.u32 %v157, 4294901760
  %159 = vmatpush1.msra.mxu0 %v158
  %160 = vmatprep.subr.mxu0 0.0
  %v161 = vand.u32 %v28, 4294901760
  %v162 = vsub.f32 %v28, %v161
  %v163 = vand.u32 %v162, 4294901760
  %v164 = vsub.f32 %v162, %v163
  %v165 = vand.u32 %v164, 4294901760
  %166 = vmatpush1.msra.mxu0 %v165
  %167 = vmatprep.subr.mxu0 0.0
  %v168 = vand.u32 %v29, 4294901760
  %v169 = vsub.f32 %v29, %v168
  %v170 = vand.u32 %v169, 4294901760
  %v171 = vsub.f32 %v169, %v170
  %v172 = vand.u32 %v171, 4294901760
  %173 = vmatpush1.msra.mxu0 %v172
  %174 = vmatprep.subr.mxu0 0.0
  %v175 = vand.u32 %v30, 4294901760
  %v176 = vsub.f32 %v30, %v175
  %v177 = vand.u32 %v176, 4294901760
  %v178 = vsub.f32 %v176, %v177
  %v179 = vand.u32 %v178, 4294901760
  %180 = vmatpush1.msra.mxu0 %v179
  %181 = vmatprep.subr.mxu0 0.0
  %v182 = vand.u32 %v31, 4294901760
  %v183 = vsub.f32 %v31, %v182
  %v184 = vand.u32 %v183, 4294901760
  %v185 = vsub.f32 %v183, %v184
  %v186 = vand.u32 %v185, 4294901760
  %187 = vmatpush1.msra.mxu0 %v186
  %188 = vmatprep.subr.mxu0 0.0
  %v189 = vand.u32 %v32, 4294901760
  %v190 = vsub.f32 %v32, %v189
  %v191 = vand.u32 %v190, 4294901760
  %v192 = vsub.f32 %v190, %v191
  %v193 = vand.u32 %v192, 4294901760
  %194 = vmatpush1.msra.mxu0 %v193
  %195 = vmatprep.subr.mxu0 0.0
  %v196 = vand.u32 %v33, 4294901760
  %v197 = vsub.f32 %v33, %v196
  %v198 = vand.u32 %v197, 4294901760
  %v199 = vsub.f32 %v197, %v198
  %v200 = vand.u32 %v199, 4294901760
  %201 = vmatpush1.msra.mxu0 %v200
  %202 = vmatprep.subr.mxu0 0.0
  %v203 = vand.u32 %v34, 4294901760
  %v204 = vsub.f32 %v34, %v203
  %v205 = vand.u32 %v204, 4294901760
  %v206 = vsub.f32 %v204, %v205
  %v207 = vand.u32 %v206, 4294901760
  %208 = vmatpush1.msra.mxu0 %v207
  %209 = vmatprep.subr.mxu0 0.0
  %v210 = vand.u32 %v35, 4294901760
  %v211 = vsub.f32 %v35, %v210
  %v212 = vand.u32 %v211, 4294901760
  %v213 = vsub.f32 %v211, %v212
  %v214 = vand.u32 %v213, 4294901760
  %215 = vmatpush1.msra.mxu0 %v214
  %216 = vmatprep.subr.mxu0 0.0
  %v217 = vand.u32 %v36, 4294901760
  %v218 = vsub.f32 %v36, %v217
  %v219 = vand.u32 %v218, 4294901760
  %v220 = vsub.f32 %v218, %v219
  %v221 = vand.u32 %v220, 4294901760
  %222 = vmatpush1.msra.mxu0 %v221
  %223 = vmatprep.subr.mxu0 0.0
  %v224 = vand.u32 %v37, 4294901760
  %v225 = vsub.f32 %v37, %v224
  %v226 = vand.u32 %v225, 4294901760
  %v227 = vsub.f32 %v225, %v226
  %v228 = vand.u32 %v227, 4294901760
  %229 = vmatpush1.msra.mxu0 %v228
  %230 = vmatprep.subr.mxu0 0.0
  %v231 = vand.u32 %v38, 4294901760
  %v232 = vsub.f32 %v38, %v231
  %v233 = vand.u32 %v232, 4294901760
  %v234 = vsub.f32 %v232, %v233
  %v235 = vand.u32 %v234, 4294901760
  %236 = vmatpush1.msra.mxu0 %v235
  %237 = vmatprep.subr.mxu0 0.0
  %v238 = vand.u32 %v39, 4294901760
  %v239 = vsub.f32 %v39, %v238
  %v240 = vand.u32 %v239, 4294901760
  %v241 = vsub.f32 %v239, %v240
  %v242 = vand.u32 %v241, 4294901760
  %243 = vmatpush1.msra.mxu0 %v242
  %244 = vmatprep.subr.mxu0 0.0
  %245 = vmatpush1.msra.mxu0 0.0
  %246 = vmatprep.subr.mxu0 0.0
  %247 = vmatpush1.msra.mxu0 0.0
  %248 = vmatprep.subr.mxu0 0.0
  %249 = vmatpush1.msra.mxu0 0.0
  %250 = vmatprep.subr.mxu0 0.0
  %251 = vmatpush1.msra.mxu0 0.0
  %252 = vmatprep.subr.mxu0 0.0
  %253 = vmatpush1.msra.mxu0 0.0
  %254 = vmatprep.subr.mxu0 0.0
  %255 = vmatpush1.msra.mxu0 0.0
  %256 = vmatprep.subr.mxu0 0.0
  %257 = vmatpush1.msra.mxu0 0.0
  %258 = vmatprep.subr.mxu0 0.0
  %259 = vmatpush1.msra.mxu0 0.0
  %260 = vmatprep.subr.mxu0 0.0
  %261 = vmatpush1.msra.mxu0 0.0
  %262 = vmatprep.subr.mxu0 0.0
  %263 = vmatpush1.msra.mxu0 0.0
  %264 = vmatprep.subr.mxu0 0.0
  %265 = vmatpush1.msra.mxu0 0.0
  %266 = vmatprep.subr.mxu0 0.0
  %267 = vmatpush1.msra.mxu0 0.0
  %268 = vmatprep.subr.mxu0 0.0
  %269 = vmatpush1.msra.mxu0 0.0
  %270 = vmatprep.subr.mxu0 0.0
  %271 = vmatpush1.msra.mxu0 0.0
  %272 = vmatprep.subr.mxu0 0.0
  %273 = vmatpush1.msra.mxu0 0.0
  %274 = vmatprep.subr.mxu0 0.0
  %275 = vmatpush1.msra.mxu0 0.0
  %276 = vmatprep.mubr.f32.mxu0 0.0
  %277 = vmatmul.mubr.f32.gmra.mrb[0].mxu0 %v23
  %v278 = vpop.f32.mrb[0].mxu0
  %v279 = vadd.f32 %v129, %v278
  %v280 = vpop.f32.mrb[0].mxu0
  %281 = vdwg.mxu0
  %282 = vmatprep.subr.mxu0 0.0
  %v283 = vand.u32 %v24, 4294901760
  %v284 = vsub.f32 %v24, %v283
  %285 = vmatpush1.msra.mxu0 %v284
  %286 = vmatprep.subr.mxu0 0.0
  %v287 = vand.u32 %v25, 4294901760
  %v288 = vsub.f32 %v25, %v287
  %289 = vmatpush1.msra.mxu0 %v288
  %290 = vmatprep.subr.mxu0 0.0
  %v291 = vand.u32 %v26, 4294901760
  %v292 = vsub.f32 %v26, %v291
  %293 = vmatpush1.msra.mxu0 %v292
  %294 = vmatprep.subr.mxu0 0.0
  %v295 = vand.u32 %v27, 4294901760
  %v296 = vsub.f32 %v27, %v295
  %297 = vmatpush1.msra.mxu0 %v296
  %298 = vmatprep.subr.mxu0 0.0
  %v299 = vand.u32 %v28, 4294901760
  %v300 = vsub.f32 %v28, %v299
  %301 = vmatpush1.msra.mxu0 %v300
  %302 = vmatprep.subr.mxu0 0.0
  %v303 = vand.u32 %v29, 4294901760
  %v304 = vsub.f32 %v29, %v303
  %305 = vmatpush1.msra.mxu0 %v304
  %306 = vmatprep.subr.mxu0 0.0
  %v307 = vand.u32 %v30, 4294901760
  %v308 = vsub.f32 %v30, %v307
  %309 = vmatpush1.msra.mxu0 %v308
  %310 = vmatprep.subr.mxu0 0.0
  %v311 = vand.u32 %v31, 4294901760
  %v312 = vsub.f32 %v31, %v311
  %313 = vmatpush1.msra.mxu0 %v312
  %314 = vmatprep.subr.mxu0 0.0
  %v315 = vand.u32 %v32, 4294901760
  %v316 = vsub.f32 %v32, %v315
  %317 = vmatpush1.msra.mxu0 %v316
  %318 = vmatprep.subr.mxu0 0.0
  %v319 = vand.u32 %v33, 4294901760
  %v320 = vsub.f32 %v33, %v319
  %321 = vmatpush1.msra.mxu0 %v320
  %322 = vmatprep.subr.mxu0 0.0
  %v323 = vand.u32 %v34, 4294901760
  %v324 = vsub.f32 %v34, %v323
  %325 = vmatpush1.msra.mxu0 %v324
  %326 = vmatprep.subr.mxu0 0.0
  %v327 = vand.u32 %v35, 4294901760
  %v328 = vsub.f32 %v35, %v327
  %329 = vmatpush1.msra.mxu0 %v328
  %330 = vmatprep.subr.mxu0 0.0
  %v331 = vand.u32 %v36, 4294901760
  %v332 = vsub.f32 %v36, %v331
  %333 = vmatpush1.msra.mxu0 %v332
  %334 = vmatprep.subr.mxu0 0.0
  %v335 = vand.u32 %v37, 4294901760
  %v336 = vsub.f32 %v37, %v335
  %337 = vmatpush1.msra.mxu0 %v336
  %338 = vmatprep.subr.mxu0 0.0
  %v339 = vand.u32 %v38, 4294901760
  %v340 = vsub.f32 %v38, %v339
  %341 = vmatpush1.msra.mxu0 %v340
  %342 = vmatprep.subr.mxu0 0.0
  %v343 = vand.u32 %v39, 4294901760
  %v344 = vsub.f32 %v39, %v343
  %345 = vmatpush1.msra.mxu0 %v344
  %346 = vmatprep.subr.mxu0 0.0
  %347 = vmatpush1.msra.mxu0 0.0
  %348 = vmatprep.subr.mxu0 0.0
  %349 = vmatpush1.msra.mxu0 0.0
  %350 = vmatprep.subr.mxu0 0.0
  %351 = vmatpush1.msra.mxu0 0.0
  %352 = vmatprep.subr.mxu0 0.0
  %353 = vmatpush1.msra.mxu0 0.0
  %354 = vmatprep.subr.mxu0 0.0
  %355 = vmatpush1.msra.mxu0 0.0
  %356 = vmatprep.subr.mxu0 0.0
  %357 = vmatpush1.msra.mxu0 0.0
  %358 = vmatprep.subr.mxu0 0.0
  %359 = vmatpush1.msra.mxu0 0.0
  %360 = vmatprep.subr.mxu0 0.0
  %361 = vmatpush1.msra.mxu0 0.0
  %362 = vmatprep.subr.mxu0 0.0
  %363 = vmatpush1.msra.mxu0 0.0
  %364 = vmatprep.subr.mxu0 0.0
  %365 = vmatpush1.msra.mxu0 0.0
  %366 = vmatprep.subr.mxu0 0.0
  %367 = vmatpush1.msra.mxu0 0.0
  %368 = vmatprep.subr.mxu0 0.0
  %369 = vmatpush1.msra.mxu0 0.0
  %370 = vmatprep.subr.mxu0 0.0
  %371 = vmatpush1.msra.mxu0 0.0
  %372 = vmatprep.subr.mxu0 0.0
  %373 = vmatpush1.msra.mxu0 0.0
  %374 = vmatprep.subr.mxu0 0.0
  %375 = vmatpush1.msra.mxu0 0.0
  %376 = vmatprep.subr.mxu0 0.0
  %377 = vmatpush1.msra.mxu0 0.0
  %378 = vmatprep.mubr.f32.mxu0 0.0
  %v379 = vsub.f32 %v23, %v23
  %380 = vmatmul.mubr.f32.gmra.mrb[0].mxu0 %v379
  %v381 = vpop.f32.mrb[0].mxu0
  %v382 = vadd.f32 %v279, %v381
  %v383 = vpop.f32.mrb[0].mxu0
  %384 = vdwg.mxu0
  %385 = vmatprep.subr.mxu0 0.0
  %v386 = vand.u32 %v24, 4294901760
  %387 = vmatpush1.msra.mxu0 %v386
  %388 = vmatprep.subr.mxu0 0.0
  %v389 = vand.u32 %v25, 4294901760
  %390 = vmatpush1.msra.mxu0 %v389
  %391 = vmatprep.subr.mxu0 0.0
  %v392 = vand.u32 %v26, 4294901760
  %393 = vmatpush1.msra.mxu0 %v392
  %394 = vmatprep.subr.mxu0 0.0
  %v395 = vand.u32 %v27, 4294901760
  %396 = vmatpush1.msra.mxu0 %v395
  %397 = vmatprep.subr.mxu0 0.0
  %v398 = vand.u32 %v28, 4294901760
  %399 = vmatpush1.msra.mxu0 %v398
  %400 = vmatprep.subr.mxu0 0.0
  %v401 = vand.u32 %v29, 4294901760
  %402 = vmatpush1.msra.mxu0 %v401
  %403 = vmatprep.subr.mxu0 0.0
  %v404 = vand.u32 %v30, 4294901760
  %405 = vmatpush1.msra.mxu0 %v404
  %406 = vmatprep.subr.mxu0 0.0
  %v407 = vand.u32 %v31, 4294901760
  %408 = vmatpush1.msra.mxu0 %v407
  %409 = vmatprep.subr.mxu0 0.0
  %v410 = vand.u32 %v32, 4294901760
  %411 = vmatpush1.msra.mxu0 %v410
  %412 = vmatprep.subr.mxu0 0.0
  %v413 = vand.u32 %v33, 4294901760
  %414 = vmatpush1.msra.mxu0 %v413
  %415 = vmatprep.subr.mxu0 0.0
  %v416 = vand.u32 %v34, 4294901760
  %417 = vmatpush1.msra.mxu0 %v416
  %418 = vmatprep.subr.mxu0 0.0
  %v419 = vand.u32 %v35, 4294901760
  %420 = vmatpush1.msra.mxu0 %v419
  %421 = vmatprep.subr.mxu0 0.0
  %v422 = vand.u32 %v36, 4294901760
  %423 = vmatpush1.msra.mxu0 %v422
  %424 = vmatprep.subr.mxu0 0.0
  %v425 = vand.u32 %v37, 4294901760
  %426 = vmatpush1.msra.mxu0 %v425
  %427 = vmatprep.subr.mxu0 0.0
  %v428 = vand.u32 %v38, 4294901760
  %429 = vmatpush1.msra.mxu0 %v428
  %430 = vmatprep.subr.mxu0 0.0
  %v431 = vand.u32 %v39, 4294901760
  %432 = vmatpush1.msra.mxu0 %v431
  %433 = vmatprep.subr.mxu0 0.0
  %434 = vmatpush1.msra.mxu0 0.0
  %435 = vmatprep.subr.mxu0 0.0
  %436 = vmatpush1.msra.mxu0 0.0
  %437 = vmatprep.subr.mxu0 0.0
  %438 = vmatpush1.msra.mxu0 0.0
  %439 = vmatprep.subr.mxu0 0.0
  %440 = vmatpush1.msra.mxu0 0.0
  %441 = vmatprep.subr.mxu0 0.0
  %442 = vmatpush1.msra.mxu0 0.0
  %443 = vmatprep.subr.mxu0 0.0
  %444 = vmatpush1.msra.mxu0 0.0
  %445 = vmatprep.subr.mxu0 0.0
  %446 = vmatpush1.msra.mxu0 0.0
  %447 = vmatprep.subr.mxu0 0.0
  %448 = vmatpush1.msra.mxu0 0.0
  %449 = vmatprep.subr.mxu0 0.0
  %450 = vmatpush1.msra.mxu0 0.0
  %451 = vmatprep.subr.mxu0 0.0
  %452 = vmatpush1.msra.mxu0 0.0
  %453 = vmatprep.subr.mxu0 0.0
  %454 = vmatpush1.msra.mxu0 0.0
  %455 = vmatprep.subr.mxu0 0.0
  %456 = vmatpush1.msra.mxu0 0.0
  %457 = vmatprep.subr.mxu0 0.0
  %458 = vmatpush1.msra.mxu0 0.0
  %459 = vmatprep.subr.mxu0 0.0
  %460 = vmatpush1.msra.mxu0 0.0
  %461 = vmatprep.subr.mxu0 0.0
  %462 = vmatpush1.msra.mxu0 0.0
  %463 = vmatprep.subr.mxu0 0.0
  %464 = vmatpush1.msra.mxu0 0.0
  %465 = vmatprep.mubr.f32.mxu0 0.0
  %v466 = vsub.f32 %v23, %v23
  %v467 = vand.u32 %v466, 4294901760
  %468 = vmatmul.mubr.f32.gmra.mrb[0].mxu0 %v467
  %v469 = vpop.f32.mrb[0].mxu0
  %v470 = vadd.f32 %v382, %v469
  %v471 = vpop.f32.mrb[0].mxu0
  %472 = vdwg.mxu0
  %473 = vmatprep.subr.mxu0 0.0
  %v474 = vand.u32 %v24, 4294901760
  %v475 = vsub.f32 %v24, %v474
  %v476 = vand.u32 %v475, 4294901760
  %477 = vmatpush1.msra.mxu0 %v476
  %478 = vmatprep.subr.mxu0 0.0
  %v479 = vand.u32 %v25, 4294901760
  %v480 = vsub.f32 %v25, %v479
  %v481 = vand.u32 %v480, 4294901760
  %482 = vmatpush1.msra.mxu0 %v481
  %483 = vmatprep.subr.mxu0 0.0
  %v484 = vand.u32 %v26, 4294901760
  %v485 = vsub.f32 %v26, %v484
  %v486 = vand.u32 %v485, 4294901760
  %487 = vmatpush1.msra.mxu0 %v486
  %488 = vmatprep.subr.mxu0 0.0
  %v489 = vand.u32 %v27, 4294901760
  %v490 = vsub.f32 %v27, %v489
  %v491 = vand.u32 %v490, 4294901760
  %492 = vmatpush1.msra.mxu0 %v491
  %493 = vmatprep.subr.mxu0 0.0
  %v494 = vand.u32 %v28, 4294901760
  %v495 = vsub.f32 %v28, %v494
  %v496 = vand.u32 %v495, 4294901760
  %497 = vmatpush1.msra.mxu0 %v496
  %498 = vmatprep.subr.mxu0 0.0
  %v499 = vand.u32 %v29, 4294901760
  %v500 = vsub.f32 %v29, %v499
  %v501 = vand.u32 %v500, 4294901760
  %502 = vmatpush1.msra.mxu0 %v501
  %503 = vmatprep.subr.mxu0 0.0
  %v504 = vand.u32 %v30, 4294901760
  %v505 = vsub.f32 %v30, %v504
  %v506 = vand.u32 %v505, 4294901760
  %507 = vmatpush1.msra.mxu0 %v506
  %508 = vmatprep.subr.mxu0 0.0
  %v509 = vand.u32 %v31, 4294901760
  %v510 = vsub.f32 %v31, %v509
  %v511 = vand.u32 %v510, 4294901760
  %512 = vmatpush1.msra.mxu0 %v511
  %513 = vmatprep.subr.mxu0 0.0
  %v514 = vand.u32 %v32, 4294901760
  %v515 = vsub.f32 %v32, %v514
  %v516 = vand.u32 %v515, 4294901760
  %517 = vmatpush1.msra.mxu0 %v516
  %518 = vmatprep.subr.mxu0 0.0
  %v519 = vand.u32 %v33, 4294901760
  %v520 = vsub.f32 %v33, %v519
  %v521 = vand.u32 %v520, 4294901760
  %522 = vmatpush1.msra.mxu0 %v521
  %523 = vmatprep.subr.mxu0 0.0
  %v524 = vand.u32 %v34, 4294901760
  %v525 = vsub.f32 %v34, %v524
  %v526 = vand.u32 %v525, 4294901760
  %527 = vmatpush1.msra.mxu0 %v526
  %528 = vmatprep.subr.mxu0 0.0
  %v529 = vand.u32 %v35, 4294901760
  %v530 = vsub.f32 %v35, %v529
  %v531 = vand.u32 %v530, 4294901760
  %532 = vmatpush1.msra.mxu0 %v531
  %533 = vmatprep.subr.mxu0 0.0
  %v534 = vand.u32 %v36, 4294901760
  %v535 = vsub.f32 %v36, %v534
  %v536 = vand.u32 %v535, 4294901760
  %537 = vmatpush1.msra.mxu0 %v536
  %538 = vmatprep.subr.mxu0 0.0
  %v539 = vand.u32 %v37, 4294901760
  %v540 = vsub.f32 %v37, %v539
  %v541 = vand.u32 %v540, 4294901760
  %542 = vmatpush1.msra.mxu0 %v541
  %543 = vmatprep.subr.mxu0 0.0
  %v544 = vand.u32 %v38, 4294901760
  %v545 = vsub.f32 %v38, %v544
  %v546 = vand.u32 %v545, 4294901760
  %547 = vmatpush1.msra.mxu0 %v546
  %548 = vmatprep.subr.mxu0 0.0
  %v549 = vand.u32 %v39, 4294901760
  %v550 = vsub.f32 %v39, %v549
  %v551 = vand.u32 %v550, 4294901760
  %552 = vmatpush1.msra.mxu0 %v551
  %553 = vmatprep.subr.mxu0 0.0
  %554 = vmatpush1.msra.mxu0 0.0
  %555 = vmatprep.subr.mxu0 0.0
  %556 = vmatpush1.msra.mxu0 0.0
  %557 = vmatprep.subr.mxu0 0.0
  %558 = vmatpush1.msra.mxu0 0.0
  %559 = vmatprep.subr.mxu0 0.0
  %560 = vmatpush1.msra.mxu0 0.0
  %561 = vmatprep.subr.mxu0 0.0
  %562 = vmatpush1.msra.mxu0 0.0
  %563 = vmatprep.subr.mxu0 0.0
  %564 = vmatpush1.msra.mxu0 0.0
  %565 = vmatprep.subr.mxu0 0.0
  %566 = vmatpush1.msra.mxu0 0.0
  %567 = vmatprep.subr.mxu0 0.0
  %568 = vmatpush1.msra.mxu0 0.0
  %569 = vmatprep.subr.mxu0 0.0
  %570 = vmatpush1.msra.mxu0 0.0
  %571 = vmatprep.subr.mxu0 0.0
  %572 = vmatpush1.msra.mxu0 0.0
  %573 = vmatprep.subr.mxu0 0.0
  %574 = vmatpush1.msra.mxu0 0.0
  %575 = vmatprep.subr.mxu0 0.0
  %576 = vmatpush1.msra.mxu0 0.0
  %577 = vmatprep.subr.mxu0 0.0
  %578 = vmatpush1.msra.mxu0 0.0
  %579 = vmatprep.subr.mxu0 0.0
  %580 = vmatpush1.msra.mxu0 0.0
  %581 = vmatprep.subr.mxu0 0.0
  %582 = vmatpush1.msra.mxu0 0.0
  %583 = vmatprep.subr.mxu0 0.0
  %584 = vmatpush1.msra.mxu0 0.0
  %585 = vmatprep.mubr.f32.mxu0 0.0
  %586 = vmatmul.mubr.f32.gmra.mrb[0].mxu0 %v23
  %v587 = vpop.f32.mrb[0].mxu0
  %v588 = vadd.f32 %v470, %v587
  %v589 = vpop.f32.mrb[0].mxu0
  %590 = vdwg.mxu0
  %591 = vmatprep.subr.mxu0 0.0
  %v592 = vand.u32 %v24, 4294901760
  %593 = vmatpush1.msra.mxu0 %v592
  %594 = vmatprep.subr.mxu0 0.0
  %v595 = vand.u32 %v25, 4294901760
  %596 = vmatpush1.msra.mxu0 %v595
  %597 = vmatprep.subr.mxu0 0.0
  %v598 = vand.u32 %v26, 4294901760
  %599 = vmatpush1.msra.mxu0 %v598
  %600 = vmatprep.subr.mxu0 0.0
  %v601 = vand.u32 %v27, 4294901760
  %602 = vmatpush1.msra.mxu0 %v601
  %603 = vmatprep.subr.mxu0 0.0
  %v604 = vand.u32 %v28, 4294901760
  %605 = vmatpush1.msra.mxu0 %v604
  %606 = vmatprep.subr.mxu0 0.0
  %v607 = vand.u32 %v29, 4294901760
  %608 = vmatpush1.msra.mxu0 %v607
  %609 = vmatprep.subr.mxu0 0.0
  %v610 = vand.u32 %v30, 4294901760
  %611 = vmatpush1.msra.mxu0 %v610
  %612 = vmatprep.subr.mxu0 0.0
  %v613 = vand.u32 %v31, 4294901760
  %614 = vmatpush1.msra.mxu0 %v613
  %615 = vmatprep.subr.mxu0 0.0
  %v616 = vand.u32 %v32, 4294901760
  %617 = vmatpush1.msra.mxu0 %v616
  %618 = vmatprep.subr.mxu0 0.0
  %v619 = vand.u32 %v33, 4294901760
  %620 = vmatpush1.msra.mxu0 %v619
  %621 = vmatprep.subr.mxu0 0.0
  %v622 = vand.u32 %v34, 4294901760
  %623 = vmatpush1.msra.mxu0 %v622
  %624 = vmatprep.subr.mxu0 0.0
  %v625 = vand.u32 %v35, 4294901760
  %626 = vmatpush1.msra.mxu0 %v625
  %627 = vmatprep.subr.mxu0 0.0
  %v628 = vand.u32 %v36, 4294901760
  %629 = vmatpush1.msra.mxu0 %v628
  %630 = vmatprep.subr.mxu0 0.0
  %v631 = vand.u32 %v37, 4294901760
  %632 = vmatpush1.msra.mxu0 %v631
  %633 = vmatprep.subr.mxu0 0.0
  %v634 = vand.u32 %v38, 4294901760
  %635 = vmatpush1.msra.mxu0 %v634
  %636 = vmatprep.subr.mxu0 0.0
  %v637 = vand.u32 %v39, 4294901760
  %638 = vmatpush1.msra.mxu0 %v637
  %639 = vmatprep.subr.mxu0 0.0
  %640 = vmatpush1.msra.mxu0 0.0
  %641 = vmatprep.subr.mxu0 0.0
  %642 = vmatpush1.msra.mxu0 0.0
  %643 = vmatprep.subr.mxu0 0.0
  %644 = vmatpush1.msra.mxu0 0.0
  %645 = vmatprep.subr.mxu0 0.0
  %646 = vmatpush1.msra.mxu0 0.0
  %647 = vmatprep.subr.mxu0 0.0
  %648 = vmatpush1.msra.mxu0 0.0
  %649 = vmatprep.subr.mxu0 0.0
  %650 = vmatpush1.msra.mxu0 0.0
  %651 = vmatprep.subr.mxu0 0.0
  %652 = vmatpush1.msra.mxu0 0.0
  %653 = vmatprep.subr.mxu0 0.0
  %654 = vmatpush1.msra.mxu0 0.0
  %655 = vmatprep.subr.mxu0 0.0
  %656 = vmatpush1.msra.mxu0 0.0
  %657 = vmatprep.subr.mxu0 0.0
  %658 = vmatpush1.msra.mxu0 0.0
  %659 = vmatprep.subr.mxu0 0.0
  %660 = vmatpush1.msra.mxu0 0.0
  %661 = vmatprep.subr.mxu0 0.0
  %662 = vmatpush1.msra.mxu0 0.0
  %663 = vmatprep.subr.mxu0 0.0
  %664 = vmatpush1.msra.mxu0 0.0
  %665 = vmatprep.subr.mxu0 0.0
  %666 = vmatpush1.msra.mxu0 0.0
  %667 = vmatprep.subr.mxu0 0.0
  %668 = vmatpush1.msra.mxu0 0.0
  %669 = vmatprep.subr.mxu0 0.0
  %670 = vmatpush1.msra.mxu0 0.0
  %671 = vmatprep.mubr.f32.mxu0 0.0
  %672 = vmatmul.mubr.f32.gmra.mrb[0].mxu0 %v23
  %v673 = vpop.f32.mrb[0].mxu0
  %v674 = vadd.f32 %v588, %v673
  %v675 = vpop.f32.mrb[0].mxu0
  %676 = vdwg.mxu0
  %v677 = vmax.f32 %v674, 0.0
  %v678 = vld [vmem:[%s2] sm:$0xff]
  %v679 = vld [vmem:[%s2 + $0x8] sm:$0xff]
  %v680 = vld [vmem:[%s2 + $0x10] sm:$0xff]
  %v681 = vld [vmem:[%s2 + $0x18] sm:$0xff]
  %s682 = sld [smem:[#allocation3]]
  %v683 = vstv %s682
  %vm684 = vcmask 261120
  %v686 = vsel %vm684, %v677, 0
  %688 = vmatprep.subr.mxu0 0.0
  %v689 = vand.u32 %v678, 4294901760
  %690 = vmatpush1.msra.mxu0 %v689
  %691 = vmatprep.subr.mxu0 0.0
  %v692 = vand.u32 %v679, 4294901760
  %693 = vmatpush1.msra.mxu0 %v692
  %694 = vmatprep.subr.mxu0 0.0
  %v695 = vand.u32 %v680, 4294901760
  %696 = vmatpush1.msra.mxu0 %v695
  %697 = vmatprep.subr.mxu0 0.0
  %v698 = vand.u32 %v681, 4294901760
  %699 = vmatpush1.msra.mxu0 %v698
  %700 = vmatprep.subr.mxu0 0.0
  %701 = vmatpush1.msra.mxu0 0.0
  %702 = vmatprep.subr.mxu0 0.0
  %703 = vmatpush1.msra.mxu0 0.0
  %704 = vmatprep.subr.mxu0 0.0
  %705 = vmatpush1.msra.mxu0 0.0
  %706 = vmatprep.subr.mxu0 0.0
  %707 = vmatpush1.msra.mxu0 0.0
  %708 = vmatprep.subr.mxu0 0.0
  %709 = vmatpush1.msra.mxu0 0.0
  %710 = vmatprep.subr.mxu0 0.0
  %711 = vmatpush1.msra.mxu0 0.0
  %712 = vmatprep.subr.mxu0 0.0
  %713 = vmatpush1.msra.mxu0 0.0
  %714 = vmatprep.subr.mxu0 0.0
  %715 = vmatpush1.msra.mxu0 0.0
  %716 = vmatprep.subr.mxu0 0.0
  %717 = vmatpush1.msra.mxu0 0.0
  %718 = vmatprep.subr.mxu0 0.0
  %719 = vmatpush1.msra.mxu0 0.0
  %720 = vmatprep.subr.mxu0 0.0
  %721 = vmatpush1.msra.mxu0 0.0
  %722 = vmatprep.subr.mxu0 0.0
  %723 = vmatpush1.msra.mxu0 0.0
  %724 = vmatprep.subr.mxu0 0.0
  %725 = vmatpush1.msra.mxu0 0.0
  %726 = vmatprep.subr.mxu0 0.0
  %727 = vmatpush1.msra.mxu0 0.0
  %728 = vmatprep.subr.mxu0 0.0
  %729 = vmatpush1.msra.mxu0 0.0
  %730 = vmatprep.subr.mxu0 0.0
  %731 = vmatpush1.msra.mxu0 0.0
  %732 = vmatprep.subr.mxu0 0.0
  %733 = vmatpush1.msra.mxu0 0.0
  %734 = vmatprep.subr.mxu0 0.0
  %735 = vmatpush1.msra.mxu0 0.0
  %736 = vmatprep.subr.mxu0 0.0
  %737 = vmatpush1.msra.mxu0 0.0
  %738 = vmatprep.subr.mxu0 0.0
  %739 = vmatpush1.msra.mxu0 0.0
  %740 = vmatprep.subr.mxu0 0.0
  %741 = vmatpush1.msra.mxu0 0.0
  %742 = vmatprep.subr.mxu0 0.0
  %743 = vmatpush1.msra.mxu0 0.0
  %744 = vmatprep.subr.mxu0 0.0
  %745 = vmatpush1.msra.mxu0 0.0
  %746 = vmatprep.subr.mxu0 0.0
  %747 = vmatpush1.msra.mxu0 0.0
  %748 = vmatprep.subr.mxu0 0.0
  %749 = vmatpush1.msra.mxu0 0.0
  %750 = vmatprep.subr.mxu0 0.0
  %751 = vmatpush1.msra.mxu0 0.0
  %752 = vmatprep.subr.mxu0 0.0
  %753 = vmatpush1.msra.mxu0 0.0
  %754 = vmatprep.subr.mxu0 0.0
  %755 = vmatpush1.msra.mxu0 0.0
  %756 = vmatprep.mubr.f32.mxu0 0.0
  %v757 = vand.u32 %v686, 4294901760
  %v758 = vsub.f32 %v686, %v757
  %v759 = vand.u32 %v758, 4294901760
  %v760 = vsub.f32 %v758, %v759
  %v761 = vand.u32 %v760, 4294901760
  %762 = vmatmul.mubr.f32.gmra.mrb[0].mxu0 %v761
  %v763 = vpop.f32.mrb[0].mxu0
  %v764 = vadd.f32 %v683, %v763
  %v765 = vpop.f32.mrb[0].mxu0
  %766 = vdwg.mxu0
  %767 = vmatprep.subr.mxu0 0.0
  %v768 = vand.u32 %v678, 4294901760
  %v769 = vsub.f32 %v678, %v768
  %v770 = vand.u32 %v769, 4294901760
  %v771 = vsub.f32 %v769, %v770
  %v772 = vand.u32 %v771, 4294901760
  %773 = vmatpush1.msra.mxu0 %v772
  %774 = vmatprep.subr.mxu0 0.0
  %v775 = vand.u32 %v679, 4294901760
  %v776 = vsub.f32 %v679, %v775
  %v777 = vand.u32 %v776, 4294901760
  %v778 = vsub.f32 %v776, %v777
  %v779 = vand.u32 %v778, 4294901760
  %780 = vmatpush1.msra.mxu0 %v779
  %781 = vmatprep.subr.mxu0 0.0
  %v782 = vand.u32 %v680, 4294901760
  %v783 = vsub.f32 %v680, %v782
  %v784 = vand.u32 %v783, 4294901760
  %v785 = vsub.f32 %v783, %v784
  %v786 = vand.u32 %v785, 4294901760
  %787 = vmatpush1.msra.mxu0 %v786
  %788 = vmatprep.subr.mxu0 0.0
  %v789 = vand.u32 %v681, 4294901760
  %v790 = vsub.f32 %v681, %v789
  %v791 = vand.u32 %v790, 4294901760
  %v792 = vsub.f32 %v790, %v791
  %v793 = vand.u32 %v792, 4294901760
  %794 = vmatpush1.msra.mxu0 %v793
  %795 = vmatprep.subr.mxu0 0.0
  %796 = vmatpush1.msra.mxu0 0.0
  %797 = vmatprep.subr.mxu0 0.0
  %798 = vmatpush1.msra.mxu0 0.0
  %799 = vmatprep.subr.mxu0 0.0
  %800 = vmatpush1.msra.mxu0 0.0
  %801 = vmatprep.subr.mxu0 0.0
  %802 = vmatpush1.msra.mxu0 0.0
  %803 = vmatprep.subr.mxu0 0.0
  %804 = vmatpush1.msra.mxu0 0.0
  %805 = vmatprep.subr.mxu0 0.0
  %806 = vmatpush1.msra.mxu0 0.0
  %807 = vmatprep.subr.mxu0 0.0
  %808 = vmatpush1.msra.mxu0 0.0
  %809 = vmatprep.subr.mxu0 0.0
  %810 = vmatpush1.msra.mxu0 0.0
  %811 = vmatprep.subr.mxu0 0.0
  %812 = vmatpush1.msra.mxu0 0.0
  %813 = vmatprep.subr.mxu0 0.0
  %814 = vmatpush1.msra.mxu0 0.0
  %815 = vmatprep.subr.mxu0 0.0
  %816 = vmatpush1.msra.mxu0 0.0
  %817 = vmatprep.subr.mxu0 0.0
  %818 = vmatpush1.msra.mxu0 0.0
  %819 = vmatprep.subr.mxu0 0.0
  %820 = vmatpush1.msra.mxu0 0.0
  %821 = vmatprep.subr.mxu0 0.0
  %822 = vmatpush1.msra.mxu0 0.0
  %823 = vmatprep.subr.mxu0 0.0
  %824 = vmatpush1.msra.mxu0 0.0
  %825 = vmatprep.subr.mxu0 0.0
  %826 = vmatpush1.msra.mxu0 0.0
  %827 = vmatprep.subr.mxu0 0.0
  %828 = vmatpush1.msra.mxu0 0.0
  %829 = vmatprep.subr.mxu0 0.0
  %830 = vmatpush1.msra.mxu0 0.0
  %831 = vmatprep.subr.mxu0 0.0
  %832 = vmatpush1.msra.mxu0 0.0
  %833 = vmatprep.subr.mxu0 0.0
  %834 = vmatpush1.msra.mxu0 0.0
  %835 = vmatprep.subr.mxu0 0.0
  %836 = vmatpush1.msra.mxu0 0.0
  %837 = vmatprep.subr.mxu0 0.0
  %838 = vmatpush1.msra.mxu0 0.0
  %839 = vmatprep.subr.mxu0 0.0
  %840 = vmatpush1.msra.mxu0 0.0
  %841 = vmatprep.subr.mxu0 0.0
  %842 = vmatpush1.msra.mxu0 0.0
  %843 = vmatprep.subr.mxu0 0.0
  %844 = vmatpush1.msra.mxu0 0.0
  %845 = vmatprep.subr.mxu0 0.0
  %846 = vmatpush1.msra.mxu0 0.0
  %847 = vmatprep.subr.mxu0 0.0
  %848 = vmatpush1.msra.mxu0 0.0
  %849 = vmatprep.subr.mxu0 0.0
  %850 = vmatpush1.msra.mxu0 0.0
  %851 = vmatprep.mubr.f32.mxu0 0.0
  %v852 = vand.u32 %v686, 4294901760
  %853 = vmatmul.mubr.f32.gmra.mrb[0].mxu0 %v852
  %v854 = vpop.f32.mrb[0].mxu0
  %v855 = vadd.f32 %v764, %v854
  %v856 = vpop.f32.mrb[0].mxu0
  %857 = vdwg.mxu0
  %858 = vmatprep.subr.mxu0 0.0
  %v859 = vand.u32 %v678, 4294901760
  %v860 = vsub.f32 %v678, %v859
  %861 = vmatpush1.msra.mxu0 %v860
  %862 = vmatprep.subr.mxu0 0.0
  %v863 = vand.u32 %v679, 4294901760
  %v864 = vsub.f32 %v679, %v863
  %865 = vmatpush1.msra.mxu0 %v864
  %866 = vmatprep.subr.mxu0 0.0
  %v867 = vand.u32 %v680, 4294901760
  %v868 = vsub.f32 %v680, %v867
  %869 = vmatpush1.msra.mxu0 %v868
  %870 = vmatprep.subr.mxu0 0.0
  %v871 = vand.u32 %v681, 4294901760
  %v872 = vsub.f32 %v681, %v871
  %873 = vmatpush1.msra.mxu0 %v872
  %874 = vmatprep.subr.mxu0 0.0
  %875 = vmatpush1.msra.mxu0 0.0
  %876 = vmatprep.subr.mxu0 0.0
  %877 = vmatpush1.msra.mxu0 0.0
  %878 = vmatprep.subr.mxu0 0.0
  %879 = vmatpush1.msra.mxu0 0.0
  %880 = vmatprep.subr.mxu0 0.0
  %881 = vmatpush1.msra.mxu0 0.0
  %882 = vmatprep.subr.mxu0 0.0
  %883 = vmatpush1.msra.mxu0 0.0
  %884 = vmatprep.subr.mxu0 0.0
  %885 = vmatpush1.msra.mxu0 0.0
  %886 = vmatprep.subr.mxu0 0.0
  %887 = vmatpush1.msra.mxu0 0.0
  %888 = vmatprep.subr.mxu0 0.0
  %889 = vmatpush1.msra.mxu0 0.0
  %890 = vmatprep.subr.mxu0 0.0
  %891 = vmatpush1.msra.mxu0 0.0
  %892 = vmatprep.subr.mxu0 0.0
  %893 = vmatpush1.msra.mxu0 0.0
  %894 = vmatprep.subr.mxu0 0.0
  %895 = vmatpush1.msra.mxu0 0.0
  %896 = vmatprep.subr.mxu0 0.0
  %897 = vmatpush1.msra.mxu0 0.0
  %898 = vmatprep.subr.mxu0 0.0
  %899 = vmatpush1.msra.mxu0 0.0
  %900 = vmatprep.subr.mxu0 0.0
  %901 = vmatpush1.msra.mxu0 0.0
  %902 = vmatprep.subr.mxu0 0.0
  %903 = vmatpush1.msra.mxu0 0.0
  %904 = vmatprep.subr.mxu0 0.0
  %905 = vmatpush1.msra.mxu0 0.0
  %906 = vmatprep.subr.mxu0 0.0
  %907 = vmatpush1.msra.mxu0 0.0
  %908 = vmatprep.subr.mxu0 0.0
  %909 = vmatpush1.msra.mxu0 0.0
  %910 = vmatprep.subr.mxu0 0.0
  %911 = vmatpush1.msra.mxu0 0.0
  %912 = vmatprep.subr.mxu0 0.0
  %913 = vmatpush1.msra.mxu0 0.0
  %914 = vmatprep.subr.mxu0 0.0
  %915 = vmatpush1.msra.mxu0 0.0
  %916 = vmatprep.subr.mxu0 0.0
  %917 = vmatpush1.msra.mxu0 0.0
  %918 = vmatprep.subr.mxu0 0.0
  %919 = vmatpush1.msra.mxu0 0.0
  %920 = vmatprep.subr.mxu0 0.0
  %921 = vmatpush1.msra.mxu0 0.0
  %922 = vmatprep.subr.mxu0 0.0
  %923 = vmatpush1.msra.mxu0 0.0
  %924 = vmatprep.subr.mxu0 0.0
  %925 = vmatpush1.msra.mxu0 0.0
  %926 = vmatprep.subr.mxu0 0.0
  %927 = vmatpush1.msra.mxu0 0.0
  %928 = vmatprep.subr.mxu0 0.0
  %929 = vmatpush1.msra.mxu0 0.0
  %930 = vmatprep.mubr.f32.mxu0 0.0
  %v931 = vand.u32 %v686, 4294901760
  %v932 = vsub.f32 %v686, %v931
  %933 = vmatmul.mubr.f32.gmra.mrb[0].mxu0 %v932
  %v934 = vpop.f32.mrb[0].mxu0
  %v935 = vadd.f32 %v855, %v934
  %v936 = vpop.f32.mrb[0].mxu0
  %937 = vdwg.mxu0
  %938 = vmatprep.subr.mxu0 0.0
  %v939 = vand.u32 %v678, 4294901760
  %940 = vmatpush1.msra.mxu0 %v939
  %941 = vmatprep.subr.mxu0 0.0
  %v942 = vand.u32 %v679, 4294901760
  %943 = vmatpush1.msra.mxu0 %v942
  %944 = vmatprep.subr.mxu0 0.0
  %v945 = vand.u32 %v680, 4294901760
  %946 = vmatpush1.msra.mxu0 %v945
  %947 = vmatprep.subr.mxu0 0.0
  %v948 = vand.u32 %v681, 4294901760
  %949 = vmatpush1.msra.mxu0 %v948
  %950 = vmatprep.subr.mxu0 0.0
  %951 = vmatpush1.msra.mxu0 0.0
  %952 = vmatprep.subr.mxu0 0.0
  %953 = vmatpush1.msra.mxu0 0.0
  %954 = vmatprep.subr.mxu0 0.0
  %955 = vmatpush1.msra.mxu0 0.0
  %956 = vmatprep.subr.mxu0 0.0
  %957 = vmatpush1.msra.mxu0 0.0
  %958 = vmatprep.subr.mxu0 0.0
  %959 = vmatpush1.msra.mxu0 0.0
  %960 = vmatprep.subr.mxu0 0.0
  %961 = vmatpush1.msra.mxu0 0.0
  %962 = vmatprep.subr.mxu0 0.0
  %963 = vmatpush1.msra.mxu0 0.0
  %964 = vmatprep.subr.mxu0 0.0
  %965 = vmatpush1.msra.mxu0 0.0
  %966 = vmatprep.subr.mxu0 0.0
  %967 = vmatpush1.msra.mxu0 0.0
  %968 = vmatprep.subr.mxu0 0.0
  %969 = vmatpush1.msra.mxu0 0.0
  %970 = vmatprep.subr.mxu0 0.0
  %971 = vmatpush1.msra.mxu0 0.0
  %972 = vmatprep.subr.mxu0 0.0
  %973 = vmatpush1.msra.mxu0 0.0
  %974 = vmatprep.subr.mxu0 0.0
  %975 = vmatpush1.msra.mxu0 0.0
  %976 = vmatprep.subr.mxu0 0.0
  %977 = vmatpush1.msra.mxu0 0.0
  %978 = vmatprep.subr.mxu0 0.0
  %979 = vmatpush1.msra.mxu0 0.0
  %980 = vmatprep.subr.mxu0 0.0
  %981 = vmatpush1.msra.mxu0 0.0
  %982 = vmatprep.subr.mxu0 0.0
  %983 = vmatpush1.msra.mxu0 0.0
  %984 = vmatprep.subr.mxu0 0.0
  %985 = vmatpush1.msra.mxu0 0.0
  %986 = vmatprep.subr.mxu0 0.0
  %987 = vmatpush1.msra.mxu0 0.0
  %988 = vmatprep.subr.mxu0 0.0
  %989 = vmatpush1.msra.mxu0 0.0
  %990 = vmatprep.subr.mxu0 0.0
  %991 = vmatpush1.msra.mxu0 0.0
  %992 = vmatprep.subr.mxu0 0.0
  %993 = vmatpush1.msra.mxu0 0.0
  %994 = vmatprep.subr.mxu0 0.0
  %995 = vmatpush1.msra.mxu0 0.0
  %996 = vmatprep.subr.mxu0 0.0
  %997 = vmatpush1.msra.mxu0 0.0
  %998 = vmatprep.subr.mxu0 0.0
  %999 = vmatpush1.msra.mxu0 0.0
  %1000 = vmatprep.subr.mxu0 0.0
  %1001 = vmatpush1.msra.mxu0 0.0
  %1002 = vmatprep.subr.mxu0 0.0
  %1003 = vmatpush1.msra.mxu0 0.0
  %1004 = vmatprep.subr.mxu0 0.0
  %1005 = vmatpush1.msra.mxu0 0.0
  %1006 = vmatprep.mubr.f32.mxu0 0.0
  %v1007 = vand.u32 %v686, 4294901760
  %v1008 = vsub.f32 %v686, %v1007
  %v1009 = vand.u32 %v1008, 4294901760
  %1010 = vmatmul.mubr.f32.gmra.mrb[0].mxu0 %v1009
  %v1011 = vpop.f32.mrb[0].mxu0
  %v1012 = vadd.f32 %v935, %v1011
  %v1013 = vpop.f32.mrb[0].mxu0
  %1014 = vdwg.mxu0
  %1015 = vmatprep.subr.mxu0 0.0
  %v1016 = vand.u32 %v678, 4294901760
  %v1017 = vsub.f32 %v678, %v1016
  %v1018 = vand.u32 %v1017, 4294901760
  %1019 = vmatpush1.msra.mxu0 %v1018
  %1020 = vmatprep.subr.mxu0 0.0
  %v1021 = vand.u32 %v679, 4294901760
  %v1022 = vsub.f32 %v679, %v1021
  %v1023 = vand.u32 %v1022, 4294901760
  %1024 = vmatpush1.msra.mxu0 %v1023
  %1025 = vmatprep.subr.mxu0 0.0
  %v1026 = vand.u32 %v680, 4294901760
  %v1027 = vsub.f32 %v680, %v1026
  %v1028 = vand.u32 %v1027, 4294901760
  %1029 = vmatpush1.msra.mxu0 %v1028
  %1030 = vmatprep.subr.mxu0 0.0
  %v1031 = vand.u32 %v681, 4294901760
  %v1032 = vsub.f32 %v681, %v1031
  %v1033 = vand.u32 %v1032, 4294901760
  %1034 = vmatpush1.msra.mxu0 %v1033
  %1035 = vmatprep.subr.mxu0 0.0
  %1036 = vmatpush1.msra.mxu0 0.0
  %1037 = vmatprep.subr.mxu0 0.0
  %1038 = vmatpush1.msra.mxu0 0.0
  %1039 = vmatprep.subr.mxu0 0.0
  %1040 = vmatpush1.msra.mxu0 0.0
  %1041 = vmatprep.subr.mxu0 0.0
  %1042 = vmatpush1.msra.mxu0 0.0
  %1043 = vmatprep.subr.mxu0 0.0
  %1044 = vmatpush1.msra.mxu0 0.0
  %1045 = vmatprep.subr.mxu0 0.0
  %1046 = vmatpush1.msra.mxu0 0.0
  %1047 = vmatprep.subr.mxu0 0.0
  %1048 = vmatpush1.msra.mxu0 0.0
  %1049 = vmatprep.subr.mxu0 0.0
  %1050 = vmatpush1.msra.mxu0 0.0
  %1051 = vmatprep.subr.mxu0 0.0
  %1052 = vmatpush1.msra.mxu0 0.0
  %1053 = vmatprep.subr.mxu0 0.0
  %1054 = vmatpush1.msra.mxu0 0.0
  %1055 = vmatprep.subr.mxu0 0.0
  %1056 = vmatpush1.msra.mxu0 0.0
  %1057 = vmatprep.subr.mxu0 0.0
  %1058 = vmatpush1.msra.mxu0 0.0
  %1059 = vmatprep.subr.mxu0 0.0
  %1060 = vmatpush1.msra.mxu0 0.0
  %1061 = vmatprep.subr.mxu0 0.0
  %1062 = vmatpush1.msra.mxu0 0.0
  %1063 = vmatprep.subr.mxu0 0.0
  %1064 = vmatpush1.msra.mxu0 0.0
  %1065 = vmatprep.subr.mxu0 0.0
  %1066 = vmatpush1.msra.mxu0 0.0
  %1067 = vmatprep.subr.mxu0 0.0
  %1068 = vmatpush1.msra.mxu0 0.0
  %1069 = vmatprep.subr.mxu0 0.0
  %1070 = vmatpush1.msra.mxu0 0.0
  %1071 = vmatprep.subr.mxu0 0.0
  %1072 = vmatpush1.msra.mxu0 0.0
  %1073 = vmatprep.subr.mxu0 0.0
  %1074 = vmatpush1.msra.mxu0 0.0
  %1075 = vmatprep.subr.mxu0 0.0
  %1076 = vmatpush1.msra.mxu0 0.0
  %1077 = vmatprep.subr.mxu0 0.0
  %1078 = vmatpush1.msra.mxu0 0.0
  %1079 = vmatprep.subr.mxu0 0.0
  %1080 = vmatpush1.msra.mxu0 0.0
  %1081 = vmatprep.subr.mxu0 0.0
  %1082 = vmatpush1.msra.mxu0 0.0
  %1083 = vmatprep.subr.mxu0 0.0
  %1084 = vmatpush1.msra.mxu0 0.0
  %1085 = vmatprep.subr.mxu0 0.0
  %1086 = vmatpush1.msra.mxu0 0.0
  %1087 = vmatprep.subr.mxu0 0.0
  %1088 = vmatpush1.msra.mxu0 0.0
  %1089 = vmatprep.subr.mxu0 0.0
  %1090 = vmatpush1.msra.mxu0 0.0
  %1091 = vmatprep.mubr.f32.mxu0 0.0
  %v1092 = vand.u32 %v686, 4294901760
  %1093 = vmatmul.mubr.f32.gmra.mrb[0].mxu0 %v1092
  %v1094 = vpop.f32.mrb[0].mxu0
  %v1095 = vadd.f32 %v1012, %v1094
  %v1096 = vpop.f32.mrb[0].mxu0
  %1097 = vdwg.mxu0
  %1098 = vmatprep.subr.mxu0 0.0
  %v1099 = vand.u32 %v678, 4294901760
  %1100 = vmatpush1.msra.mxu0 %v1099
  %1101 = vmatprep.subr.mxu0 0.0
  %v1102 = vand.u32 %v679, 4294901760
  %1103 = vmatpush1.msra.mxu0 %v1102
  %1104 = vmatprep.subr.mxu0 0.0
  %v1105 = vand.u32 %v680, 4294901760
  %1106 = vmatpush1.msra.mxu0 %v1105
  %1107 = vmatprep.subr.mxu0 0.0
  %v1108 = vand.u32 %v681, 4294901760
  %1109 = vmatpush1.msra.mxu0 %v1108
  %1110 = vmatprep.subr.mxu0 0.0
  %1111 = vmatpush1.msra.mxu0 0.0
  %1112 = vmatprep.subr.mxu0 0.0
  %1113 = vmatpush1.msra.mxu0 0.0
  %1114 = vmatprep.subr.mxu0 0.0
  %1115 = vmatpush1.msra.mxu0 0.0
  %1116 = vmatprep.subr.mxu0 0.0
  %1117 = vmatpush1.msra.mxu0 0.0
  %1118 = vmatprep.subr.mxu0 0.0
  %1119 = vmatpush1.msra.mxu0 0.0
  %1120 = vmatprep.subr.mxu0 0.0
  %1121 = vmatpush1.msra.mxu0 0.0
  %1122 = vmatprep.subr.mxu0 0.0
  %1123 = vmatpush1.msra.mxu0 0.0
  %1124 = vmatprep.subr.mxu0 0.0
  %1125 = vmatpush1.msra.mxu0 0.0
  %1126 = vmatprep.subr.mxu0 0.0
  %1127 = vmatpush1.msra.mxu0 0.0
  %1128 = vmatprep.subr.mxu0 0.0
  %1129 = vmatpush1.msra.mxu0 0.0
  %1130 = vmatprep.subr.mxu0 0.0
  %1131 = vmatpush1.msra.mxu0 0.0
  %1132 = vmatprep.subr.mxu0 0.0
  %1133 = vmatpush1.msra.mxu0 0.0
  %1134 = vmatprep.subr.mxu0 0.0
  %1135 = vmatpush1.msra.mxu0 0.0
  %1136 = vmatprep.subr.mxu0 0.0
  %1137 = vmatpush1.msra.mxu0 0.0
  %1138 = vmatprep.subr.mxu0 0.0
  %1139 = vmatpush1.msra.mxu0 0.0
  %1140 = vmatprep.subr.mxu0 0.0
  %1141 = vmatpush1.msra.mxu0 0.0
  %1142 = vmatprep.subr.mxu0 0.0
  %1143 = vmatpush1.msra.mxu0 0.0
  %1144 = vmatprep.subr.mxu0 0.0
  %1145 = vmatpush1.msra.mxu0 0.0
  %1146 = vmatprep.subr.mxu0 0.0
  %1147 = vmatpush1.msra.mxu0 0.0
  %1148 = vmatprep.subr.mxu0 0.0
  %1149 = vmatpush1.msra.mxu0 0.0
  %1150 = vmatprep.subr.mxu0 0.0
  %1151 = vmatpush1.msra.mxu0 0.0
  %1152 = vmatprep.subr.mxu0 0.0
  %1153 = vmatpush1.msra.mxu0 0.0
  %1154 = vmatprep.subr.mxu0 0.0
  %1155 = vmatpush1.msra.mxu0 0.0
  %1156 = vmatprep.subr.mxu0 0.0
  %1157 = vmatpush1.msra.mxu0 0.0
  %1158 = vmatprep.subr.mxu0 0.0
  %1159 = vmatpush1.msra.mxu0 0.0
  %1160 = vmatprep.subr.mxu0 0.0
  %1161 = vmatpush1.msra.mxu0 0.0
  %1162 = vmatprep.subr.mxu0 0.0
  %1163 = vmatpush1.msra.mxu0 0.0
  %1164 = vmatprep.subr.mxu0 0.0
  %1165 = vmatpush1.msra.mxu0 0.0
  %1166 = vmatprep.mubr.f32.mxu0 0.0
  %v1167 = vand.u32 %v686, 4294901760
  %1168 = vmatmul.mubr.f32.gmra.mrb[0].mxu0 %v1167
  %v1169 = vpop.f32.mrb[0].mxu0
  %v1170 = vadd.f32 %v1095, %v1169
  %v1171 = vpop.f32.mrb[0].mxu0
  %1172 = vdwg.mxu0
  %v1173 = vmax.f32 %v1170, 0.0
  %vm1174 = vcmask 1024
  %1175 = vst.msk [vmem:[%s5] sm:$0x3] %vm1174, %v1173
  // Predicated region
  $region22: #{tran_layer_forward.1} parent=0 // pred_check
    _
  $region23: #{tran_layer_forward.1} parent=0 // pred_check_branch
    %1177 = sbr.rel (0) target = $region25
  $region24: #{tran_layer_forward.1} parent=0 // pred_region
    _
  $region25: #{tran_layer_forward.1} parent=0 // pred_fallthru
    _
  // Predicated region
  $region26: #{tran_layer_forward.1} parent=0 // pred_check
    _
  $region27: #{tran_layer_forward.1} parent=0 // pred_check_branch
    %1179 = sbr.rel (0) target = $region29
  $region28: #{tran_layer_forward.1} parent=0 // pred_region
    _
  $region29: #{tran_layer_forward.1} parent=0 // pred_fallthru
    _

</llo_original>
